<compile_context>
chip_gen: v6e
topology: v6e:2x2x1
jax: 0.10.0
libtpu: 0.0.40
codegen_flags: <defaults>
</compile_context>

<pallas_src>
import functools

import jax
import jax.numpy as jnp
from jax.experimental import pallas as pl
from jax.experimental.pallas import tpu as pltpu


def _round_up(n, m):
    return ((n + m - 1) // m) * m


def _mlp_kernel(x_ref, w1_ref, b1_ref, w2_ref, b2_ref, w3_ref, b3_ref, o_ref):
    x = x_ref[...]
    # fc1 + tanh
    h = jnp.dot(x, w1_ref[...], preferred_element_type=jnp.float32)
    h = jnp.tanh(h + b1_ref[...])
    # fc2 + tanh
    h = jnp.dot(h, w2_ref[...], preferred_element_type=jnp.float32)
    h = jnp.tanh(h + b2_ref[...])
    # fc3
    logits = jnp.dot(h, w3_ref[...], preferred_element_type=jnp.float32)
    logits = logits + b3_ref[...]
    # softmax over dim=1 (last axis of the 2-D block), numerically stable
    m = jnp.max(logits, axis=-1, keepdims=True)
    e = jnp.exp(logits - m)
    denom = jnp.sum(e, axis=-1, keepdims=True)
    # exact reciprocal keeps the 1e-5 allclose; approx=True would use the idle
    # EUP vrcp slot at slightly reduced precision.
    o_ref[...] = (e * pl.reciprocal(denom, approx=False)).astype(o_ref.dtype)


@functools.partial(jax.jit, static_argnames=("tile_b",))
def net_gaussian_forward(x, params, *, tile_b=1024):
    """x: (B, num_feats) float32; params: dict of w1,b1,w2,b2,w3,b3."""
    w1, b1, w2, b2, w3, b3 = (params[k] for k in ("w1", "b1", "w2", "b2", "w3", "b3"))
    B, num_feats = x.shape
    hidden = w1.shape[1]
    num_classes = w3.shape[1]

    # Biases as (1, N) so they map to a single sublane-broadcast vreg.
    b1_2d = b1.reshape(1, hidden)
    b2_2d = b2.reshape(1, hidden)
    b3_2d = b3.reshape(1, num_classes)

    # Batch tile: multiple of 8 (sublane), capped by tile_b; pad B up to a
    # multiple of the tile (padded rows are sliced off after the call).
    tb = min(tile_b, _round_up(B, 8))
    b_pad = _round_up(B, tb)
    if b_pad != B:
        x = jnp.pad(x, ((0, b_pad - B), (0, 0)))
    grid = (b_pad // tb,)

    const_spec = lambda shape: pl.BlockSpec(shape, lambda i: (0, 0))

    flops = 2 * b_pad * (num_feats * hidden + hidden * hidden + hidden * num_classes)
    transcendentals = b_pad * (2 * hidden + num_classes)  # tanh x2 + exp
    bytes_accessed = 4 * (
        b_pad * (num_feats + num_classes)
        + num_feats * hidden + hidden * hidden + hidden * num_classes
        + 2 * hidden + num_classes
    )

    out = pl.pallas_call(
        _mlp_kernel,
        out_shape=jax.ShapeDtypeStruct((b_pad, num_classes), jnp.float32),
        grid=grid,
        in_specs=[
            pl.BlockSpec((tb, num_feats), lambda i: (i, 0)),       # x: tiled over batch
            const_spec((num_feats, hidden)),                       # w1: resident
            const_spec((1, hidden)),                               # b1
            const_spec((hidden, hidden)),                          # w2
            const_spec((1, hidden)),                               # b2
            const_spec((hidden, num_classes)),                     # w3
            const_spec((1, num_classes)),                          # b3
        ],
        out_specs=pl.BlockSpec((tb, num_classes), lambda i: (i, 0)),
        compiler_params=pltpu.CompilerParams(
            dimension_semantics=("parallel",),  # megacore split on v7x; harmless on v5e/v6e
        ),
        cost_estimate=pl.CostEstimate(
            flops=flops,
            transcendentals=transcendentals,
            bytes_accessed=bytes_accessed,
        ),
    )(x, w1, b1_2d, w2, b2_2d, w3, b3_2d)

    return out[:B] if b_pad != B else out


def init_params(key, num_feats, hidden_size, num_classes):
    """Deterministic PyTorch-Linear-style init: U(-1/sqrt(fan_in), 1/sqrt(fan_in))."""
    ks = jax.random.split(key, 6)

    def linear(kw, kb, fan_in, fan_out):
        bound = 1.0 / jnp.sqrt(jnp.float32(fan_in))
        w = jax.random.uniform(kw, (fan_in, fan_out), jnp.float32, -bound, bound)
        b = jax.random.uniform(kb, (fan_out,), jnp.float32, -bound, bound)
        return w, b

    w1, b1 = linear(ks[0], ks[1], num_feats, hidden_size)
    w2, b2 = linear(ks[2], ks[3], hidden_size, hidden_size)
    w3, b3 = linear(ks[4], ks[5], hidden_size, num_classes)
    return {"w1": w1, "b1": b1, "w2": w2, "b2": b2, "w3": w3, "b3": b3}


def _reference(x, p):
    h = jnp.tanh(x @ p["w1"] + p["b1"])
    h = jnp.tanh(h @ p["w2"] + p["b2"])
    logits = h @ p["w3"] + p["b3"]
    return jax.nn.softmax(logits, axis=1)


if __name__ == "__main__":
    key = jax.random.PRNGKey(0)
    k_x, k_x2, k_p = jax.random.split(key, 3)

    batch, num_feats, hidden_size, num_classes = 8, 32, 32, 8
    params = init_params(k_p, num_feats, hidden_size, num_classes)

    # Case 1: small batch (single tile).
    x = jax.random.normal(k_x, (batch, num_feats), dtype=jnp.float32)
    out = jax.block_until_ready(net_gaussian_forward(x, params))
    ref = _reference(x, params)
    assert out.shape == (batch, num_classes)
    assert jnp.allclose(out, ref, atol=1e-5, rtol=1e-5), "mismatch vs JAX reference"
    assert jnp.allclose(jnp.sum(out, axis=1), 1.0, atol=1e-5), "softmax rows must sum to 1"

    # Case 2: batch not a multiple of the sublane tile (exercises padding path).
    batch2 = 20
    x2 = jax.random.normal(k_x2, (batch2, num_feats), dtype=jnp.float32)
    out2 = jax.block_until_ready(net_gaussian_forward(x2, params))
    ref2 = _reference(x2, params)
    assert out2.shape == (batch2, num_classes)
    assert jnp.allclose(out2, ref2, atol=1e-5, rtol=1e-5), "mismatch vs JAX reference (padded)"

    print("KERNEL_OK")
</pallas_src>

<mosaic_0001>
module attributes {stable_mosaic.version = 11 : i64} {
  func.func @_mlp_kernel(%arg0: i32, %arg1: memref<8x32xf32, #tpu.memory_space<vmem>>, %arg2: memref<32x32xf32, #tpu.memory_space<vmem>>, %arg3: memref<1x32xf32, #tpu.memory_space<vmem>>, %arg4: memref<32x32xf32, #tpu.memory_space<vmem>>, %arg5: memref<1x32xf32, #tpu.memory_space<vmem>>, %arg6: memref<32x8xf32, #tpu.memory_space<vmem>>, %arg7: memref<1x8xf32, #tpu.memory_space<vmem>>, %arg8: memref<8x8xf32, #tpu.memory_space<vmem>>) attributes {dimension_semantics = [#tpu.dimension_semantics<parallel>], iteration_bounds = array<i64: 1>, scalar_prefetch = 0 : i64, scratch_operands = 0 : i64, tpu.core_type = #tpu.core_type<tc>, window_params = [{transform_indices = @transform_0, window_bounds = array<i64: 8, 32>}, {pipeline_mode = #tpu.pipeline_mode<synchronous>, transform_indices = @transform_1, window_bounds = array<i64: 32, 32>}, {pipeline_mode = #tpu.pipeline_mode<synchronous>, transform_indices = @transform_2, window_bounds = array<i64: 1, 32>}, {pipeline_mode = #tpu.pipeline_mode<synchronous>, transform_indices = @transform_3, window_bounds = array<i64: 32, 32>}, {pipeline_mode = #tpu.pipeline_mode<synchronous>, transform_indices = @transform_4, window_bounds = array<i64: 1, 32>}, {pipeline_mode = #tpu.pipeline_mode<synchronous>, transform_indices = @transform_5, window_bounds = array<i64: 32, 8>}, {pipeline_mode = #tpu.pipeline_mode<synchronous>, transform_indices = @transform_6, window_bounds = array<i64: 1, 8>}, {transform_indices = @transform_7, window_bounds = array<i64: 8, 8>}]} {
    %c0 = arith.constant 0 : index
    %c0_0 = arith.constant 0 : index
    %0 = vector.load %arg1[%c0, %c0_0] : memref<8x32xf32, #tpu.memory_space<vmem>>, vector<8x32xf32>
    %c0_1 = arith.constant 0 : index
    %c0_2 = arith.constant 0 : index
    %1 = vector.load %arg2[%c0_1, %c0_2] : memref<32x32xf32, #tpu.memory_space<vmem>>, vector<32x32xf32>
    %cst = arith.constant dense<0.000000e+00> : vector<8x32xf32>
    %2 = tpu.matmul %0, %1, %cst {dimension_numbers = #tpu.dot_dimension_numbers<[1], [0], [0], [1], [0, 0, 1, 1], [], []>} : vector<8x32xf32>, vector<32x32xf32>, vector<8x32xf32> -> vector<8x32xf32>
    %c0_3 = arith.constant 0 : index
    %c0_4 = arith.constant 0 : index
    %3 = vector.load %arg3[%c0_3, %c0_4] : memref<1x32xf32, #tpu.memory_space<vmem>>, vector<1x32xf32>
    %4 = vector.broadcast %3 : vector<1x32xf32> to vector<8x32xf32>
    %5 = arith.addf %2, %4 : vector<8x32xf32>
    %6 = math.tanh %5 : vector<8x32xf32>
    %c0_5 = arith.constant 0 : index
    %c0_6 = arith.constant 0 : index
    %7 = vector.load %arg4[%c0_5, %c0_6] : memref<32x32xf32, #tpu.memory_space<vmem>>, vector<32x32xf32>
    %cst_7 = arith.constant dense<0.000000e+00> : vector<8x32xf32>
    %8 = tpu.matmul %6, %7, %cst_7 {dimension_numbers = #tpu.dot_dimension_numbers<[1], [0], [0], [1], [0, 0, 1, 1], [], []>} : vector<8x32xf32>, vector<32x32xf32>, vector<8x32xf32> -> vector<8x32xf32>
    %c0_8 = arith.constant 0 : index
    %c0_9 = arith.constant 0 : index
    %9 = vector.load %arg5[%c0_8, %c0_9] : memref<1x32xf32, #tpu.memory_space<vmem>>, vector<1x32xf32>
    %10 = vector.broadcast %9 : vector<1x32xf32> to vector<8x32xf32>
    %11 = arith.addf %8, %10 : vector<8x32xf32>
    %12 = math.tanh %11 : vector<8x32xf32>
    %c0_10 = arith.constant 0 : index
    %c0_11 = arith.constant 0 : index
    %13 = vector.load %arg6[%c0_10, %c0_11] : memref<32x8xf32, #tpu.memory_space<vmem>>, vector<32x8xf32>
    %cst_12 = arith.constant dense<0.000000e+00> : vector<8x8xf32>
    %14 = tpu.matmul %12, %13, %cst_12 {dimension_numbers = #tpu.dot_dimension_numbers<[1], [0], [0], [1], [0, 0, 1, 1], [], []>} : vector<8x32xf32>, vector<32x8xf32>, vector<8x8xf32> -> vector<8x8xf32>
    %c0_13 = arith.constant 0 : index
    %c0_14 = arith.constant 0 : index
    %15 = vector.load %arg7[%c0_13, %c0_14] : memref<1x8xf32, #tpu.memory_space<vmem>>, vector<1x8xf32>
    %16 = vector.broadcast %15 : vector<1x8xf32> to vector<8x8xf32>
    %17 = arith.addf %14, %16 : vector<8x8xf32>
    %cst_15 = arith.constant dense<0xFF800000> : vector<8xf32>
    %18 = vector.multi_reduction <maximumf>, %17, %cst_15 [1] : vector<8x8xf32> to vector<8xf32>
    %19 = vector.shape_cast %18 : vector<8xf32> to vector<8x1xf32>
    %20 = vector.broadcast %19 : vector<8x1xf32> to vector<8x8xf32>
    %21 = arith.subf %17, %20 : vector<8x8xf32>
    %22 = math.exp %21 : vector<8x8xf32>
    %cst_16 = arith.constant dense<0.000000e+00> : vector<8xf32>
    %23 = vector.multi_reduction <add>, %22, %cst_16 [1] : vector<8x8xf32> to vector<8xf32>
    %24 = vector.shape_cast %23 : vector<8xf32> to vector<8x1xf32>
    %25 = tpu.reciprocal %24 : vector<8x1xf32> -> vector<8x1xf32>
    %26 = vector.broadcast %25 : vector<8x1xf32> to vector<8x8xf32>
    %27 = arith.mulf %22, %26 : vector<8x8xf32>
    %c0_17 = arith.constant 0 : index
    %c0_18 = arith.constant 0 : index
    %28 = vector.load %arg8[%c0_17, %c0_18] : memref<8x8xf32, #tpu.memory_space<vmem>>, vector<8x8xf32>
    tpu.vector_store %arg8[%c0_17, %c0_18], %27 {strides = array<i32>} : memref<8x8xf32, #tpu.memory_space<vmem>>, vector<8x8xf32>,
    return
  }
  func.func @transform_0(%arg0: i32) -> (i32, i32) {
    %c0_i32 = arith.constant 0 : i32
    %c0_i32_0 = arith.constant 0 : i32
    return %arg0, %c0_i32 : i32, i32
  }
  func.func @transform_1(%arg0: i32) -> (i32, i32) {
    %c0_i32 = arith.constant 0 : i32
    %c0_i32_0 = arith.constant 0 : i32
    %c0_i32_1 = arith.constant 0 : i32
    return %c0_i32, %c0_i32_0 : i32, i32
  }
  func.func @transform_2(%arg0: i32) -> (i32, i32) {
    %c0_i32 = arith.constant 0 : i32
    %c0_i32_0 = arith.constant 0 : i32
    %c0_i32_1 = arith.constant 0 : i32
    return %c0_i32, %c0_i32_0 : i32, i32
  }
  func.func @transform_3(%arg0: i32) -> (i32, i32) {
    %c0_i32 = arith.constant 0 : i32
    %c0_i32_0 = arith.constant 0 : i32
    %c0_i32_1 = arith.constant 0 : i32
    return %c0_i32, %c0_i32_0 : i32, i32
  }
  func.func @transform_4(%arg0: i32) -> (i32, i32) {
    %c0_i32 = arith.constant 0 : i32
    %c0_i32_0 = arith.constant 0 : i32
    %c0_i32_1 = arith.constant 0 : i32
    return %c0_i32, %c0_i32_0 : i32, i32
  }
  func.func @transform_5(%arg0: i32) -> (i32, i32) {
    %c0_i32 = arith.constant 0 : i32
    %c0_i32_0 = arith.constant 0 : i32
    %c0_i32_1 = arith.constant 0 : i32
    return %c0_i32, %c0_i32_0 : i32, i32
  }
  func.func @transform_6(%arg0: i32) -> (i32, i32) {
    %c0_i32 = arith.constant 0 : i32
    %c0_i32_0 = arith.constant 0 : i32
    %c0_i32_1 = arith.constant 0 : i32
    return %c0_i32, %c0_i32_0 : i32, i32
  }
  func.func @transform_7(%arg0: i32) -> (i32, i32) {
    %c0_i32 = arith.constant 0 : i32
    %c0_i32_0 = arith.constant 0 : i32
    return %arg0, %c0_i32 : i32, i32
  }
}

</mosaic_0001>

<llo_original>
// kernel: net_gaussian_forward.1
$region0: #{net_gaussian_forward.1}
  #allocation0 [shape = 'u32[]', space=smem, size = 0x4, offset = 0x4, fixed_abs, tag = 'smem constant byte address 0x4 - core index']
  #allocation1 [shape = 'u32[144,128]{1,0:T(1,128)}', space=vmem, size = 0x12000, scoped, tag = 'internal scratch']
  %s0 = inlined_call_operand.vmem [shape: f32[8,32], index: 0, kind: input, shape index: {}]
  %s1 = inlined_call_operand.vmem [shape: f32[32,32], index: 1, kind: input, shape index: {}]
  %s2 = inlined_call_operand.vmem [shape: f32[1,32], index: 2, kind: input, shape index: {}]
  %s3 = inlined_call_operand.hbm [shape: f32[32,32], index: 3, kind: input, shape index: {}]
  %s4 = inlined_call_operand.vmem [shape: f32[1,32], index: 4, kind: input, shape index: {}]
  %s5 = inlined_call_operand.vmem [shape: f32[32,8], index: 5, kind: input, shape index: {}]
  %s6 = inlined_call_operand.vmem [shape: f32[1,8], index: 6, kind: input, shape index: {}]
  %s7 = inlined_call_operand.hbm [shape: f32[8,8], index: 7, kind: output, shape index: {}]
  %s8 = sld [smem:[#allocation0]]
  $region42: #{net_gaussian_forward.1} parent=0
    _
  %s10 = ssub.s32 1, %s8
  %s11 = scalar_select 0, %s10, %s8
  $region1: #{net_gaussian_forward.1} parent=0
    #allocation2 [shape = 'u8[16384]{0}', space=vmem, size = 0x4000, scoped, tag = 'input window, operand 3, single buffered']
    #allocation3 [shape = 's32[1]{0}', space=sflag, size = 0x4, scoped, tag = 'scoped memory for net_gaussian_forward.1']
    #allocation4 [shape = 's32[1]{0}', space=sflag, size = 0x4, scoped, tag = 'scoped memory for net_gaussian_forward.1']
    #allocation5 [shape = 'u8[4096]{0}', space=vmem, size = 0x1000, scoped, tag = 'output window, operand 0, single buffered']
    %12 = vsyncpa [#allocation3], 0
    %13 = vsyncpa [#allocation4], 0
    // Predicated region
    $region2: #{net_gaussian_forward.1} parent=1 // pred_check
      _
    $region3: #{net_gaussian_forward.1} parent=1 // pred_check_branch
      %15 = sbr.rel (0) target = $region5
    $region4: #{net_gaussian_forward.1} parent=1 // pred_region
      _
    $region5: #{net_gaussian_forward.1} parent=1 // pred_fallthru
      _
    // Predicated region
    $region6: #{net_gaussian_forward.1} parent=1 // pred_check
      _
    $region7: #{net_gaussian_forward.1} parent=1 // pred_check_branch
      %17 = sbr.rel (0) target = $region9
    $region8: #{net_gaussian_forward.1} parent=1 // pred_region
      _
    $region9: #{net_gaussian_forward.1} parent=1 // pred_fallthru
      _
    // Predicated region
    $region10: #{net_gaussian_forward.1} parent=1 // pred_check
      _
    $region11: #{net_gaussian_forward.1} parent=1 // pred_check_branch
      %19 = sbr.rel (0) target = $region13
    $region12: #{net_gaussian_forward.1} parent=1 // pred_region
      _
    $region13: #{net_gaussian_forward.1} parent=1 // pred_fallthru
      _
    // Predicated region
    $region14: #{net_gaussian_forward.1} parent=1 // pred_check
      _
    $region15: #{net_gaussian_forward.1} parent=1 // pred_check_branch
      %21 = sbr.rel (0) target = $region17
    $region16: #{net_gaussian_forward.1} parent=1 // pred_region
      %s23 = ssub.s32 512, 512
      %24 = vsyncadd [#allocation3], %s23
      %s25 = sshll.u32 [#allocation2], 4
      %s26 = int_to_ptr.vmem [resolvable:$true] %s25
      %31 = dma.hbm_to_vmem [thread:$0]  %s3, 512, %s26, [#allocation3], 128, 128, 8
    $region17: #{net_gaussian_forward.1} parent=1 // pred_fallthru
      _
    // Predicated region
    $region18: #{net_gaussian_forward.1} parent=1 // pred_check
      _
    $region19: #{net_gaussian_forward.1} parent=1 // pred_check_branch
      %33 = sbr.rel (0) target = $region21
    $region20: #{net_gaussian_forward.1} parent=1 // pred_region
      _
    $region21: #{net_gaussian_forward.1} parent=1 // pred_fallthru
      _
    // Predicated region
    $region22: #{net_gaussian_forward.1} parent=1 // pred_check
      _
    $region23: #{net_gaussian_forward.1} parent=1 // pred_check_branch
      %35 = sbr.rel (0) target = $region25
    $region24: #{net_gaussian_forward.1} parent=1 // pred_region
      _
    $region25: #{net_gaussian_forward.1} parent=1 // pred_fallthru
      _
    // Predicated region
    $region26: #{net_gaussian_forward.1} parent=1 // pred_check
      _
    $region27: #{net_gaussian_forward.1} parent=1 // pred_check_branch
      %37 = sbr.rel (0) target = $region29
    $region28: #{net_gaussian_forward.1} parent=1 // pred_region
      _
    $region29: #{net_gaussian_forward.1} parent=1 // pred_fallthru
      _
    // Predicated region
    $region30: #{net_gaussian_forward.1} parent=1 // pred_check
      _
    $region31: #{net_gaussian_forward.1} parent=1 // pred_check_branch
      %39 = sbr.rel (0) target = $region33
    $region32: #{net_gaussian_forward.1} parent=1 // pred_region
      %40 = dma.done [#allocation3], 512
    $region33: #{net_gaussian_forward.1} parent=1 // pred_fallthru
      _
    %v41 = vld [vmem:[%s0] sm:$0xff]
    %v42 = vld [vmem:[%s1] sm:$0xff]
    %v43 = vld [vmem:[%s1 + $0x8] sm:$0xff]
    %v44 = vld [vmem:[%s1 + $0x10] sm:$0xff]
    %v45 = vld [vmem:[%s1 + $0x18] sm:$0xff]
    %v46 = vld [vmem:[%s2] sm:$0x1]
    %v48 = vlaneseq
    %v49 = vshrl.u32 %v48, 7
    %v50 = vsub.s32 0, %v49
    %v51 = vrot.slane %v46, %v50
    %vm53 = vcmask 261120
    %v55 = vsel %vm53, %v41, 0
    %57 = vmatprep.subr.mxu0 0.0
    %58 = vmatpush1.msra.mxu0 0.0
    %59 = vmatprep.subr.mxu0 0.0
    %60 = vmatpush1.msra.mxu0 0.0
    %61 = vmatprep.subr.mxu0 0.0
    %62 = vmatpush1.msra.mxu0 0.0
    %63 = vmatprep.subr.mxu0 0.0
    %64 = vmatpush1.msra.mxu0 0.0
    %65 = vmatprep.subr.mxu0 0.0
    %66 = vmatpush1.msra.mxu0 0.0
    %67 = vmatprep.subr.mxu0 0.0
    %68 = vmatpush1.msra.mxu0 0.0
    %69 = vmatprep.subr.mxu0 0.0
    %70 = vmatpush1.msra.mxu0 0.0
    %71 = vmatprep.subr.mxu0 0.0
    %72 = vmatpush1.msra.mxu0 0.0
    %73 = vmatprep.subr.mxu0 0.0
    %74 = vmatpush1.msra.mxu0 0.0
    %75 = vmatprep.subr.mxu0 0.0
    %76 = vmatpush1.msra.mxu0 0.0
    %77 = vmatprep.subr.mxu0 0.0
    %78 = vmatpush1.msra.mxu0 0.0
    %79 = vmatprep.subr.mxu0 0.0
    %80 = vmatpush1.msra.mxu0 0.0
    %81 = vmatprep.subr.mxu0 0.0
    %82 = vmatpush1.msra.mxu0 %v45
    %83 = vmatprep.subr.mxu0 0.0
    %84 = vmatpush1.msra.mxu0 %v44
    %85 = vmatprep.subr.mxu0 0.0
    %86 = vmatpush1.msra.mxu0 %v43
    %87 = vmatprep.subr.mxu0 0.0
    %88 = vmatpush1.msra.mxu0 %v42
    %89 = vmatprep.subr.mxu0 0.0
    %90 = vmatpush2.msra.mxu0 0.0
    %91 = vmatprep.subr.mxu0 0.0
    %92 = vmatpush2.msra.mxu0 0.0
    %93 = vmatprep.subr.mxu0 0.0
    %94 = vmatpush2.msra.mxu0 0.0
    %95 = vmatprep.subr.mxu0 0.0
    %96 = vmatpush2.msra.mxu0 0.0
    %97 = vmatprep.subr.mxu0 0.0
    %98 = vmatpush2.msra.mxu0 0.0
    %99 = vmatprep.subr.mxu0 0.0
    %100 = vmatpush2.msra.mxu0 0.0
    %101 = vmatprep.subr.mxu0 0.0
    %102 = vmatpush2.msra.mxu0 0.0
    %103 = vmatprep.subr.mxu0 0.0
    %104 = vmatpush2.msra.mxu0 0.0
    %105 = vmatprep.subr.mxu0 0.0
    %106 = vmatpush2.msra.mxu0 0.0
    %107 = vmatprep.subr.mxu0 0.0
    %108 = vmatpush2.msra.mxu0 0.0
    %109 = vmatprep.subr.mxu0 0.0
    %110 = vmatpush2.msra.mxu0 0.0
    %111 = vmatprep.subr.mxu0 0.0
    %112 = vmatpush2.msra.mxu0 0.0
    %113 = vmatprep.subr.mxu0 0.0
    %114 = vmatpush2.msra.mxu0 0.0
    %115 = vmatprep.subr.mxu0 0.0
    %116 = vmatpush2.msra.mxu0 0.0
    %117 = vmatprep.subr.mxu0 0.0
    %118 = vmatpush2.msra.mxu0 0.0
    %119 = vmatprep.subr.mxu0 0.0
    %120 = vmatpush2.msra.mxu0 0.0
    %121 = vmatprep.mubr.f32.mxu0 0.0
    %122 = vmatmul.mubr.f32.gmra.mxu0 %v55
    %v123 = vpop.f32.mrf.mxu0
    %v124 = vadd.f32 %v51, %v123
    %v125 = vpop.f32.mrf.mxu0
    %126 = vdwg.mxu0
    %v127 = vtanh.pop %v124
    %v128 = vld [vmem:[#allocation2] sm:$0xff]
    %v129 = vld [vmem:[#allocation2 + $0x8] sm:$0xff]
    %v130 = vld [vmem:[#allocation2 + $0x10] sm:$0xff]
    %v131 = vld [vmem:[#allocation2 + $0x18] sm:$0xff]
    %v132 = vld [vmem:[%s4] sm:$0x1]
    %v134 = vlaneseq
    %v135 = vshrl.u32 %v134, 7
    %v136 = vsub.s32 0, %v135
    %v137 = vrot.slane %v132, %v136
    %v140 = vsel %vm53, %v127, 0
    %142 = vmatprep.subr.mxu0 0.0
    %143 = vmatpush1.msra.mxu0 0.0
    %144 = vmatprep.subr.mxu0 0.0
    %145 = vmatpush1.msra.mxu0 0.0
    %146 = vmatprep.subr.mxu0 0.0
    %147 = vmatpush1.msra.mxu0 0.0
    %148 = vmatprep.subr.mxu0 0.0
    %149 = vmatpush1.msra.mxu0 0.0
    %150 = vmatprep.subr.mxu0 0.0
    %151 = vmatpush1.msra.mxu0 0.0
    %152 = vmatprep.subr.mxu0 0.0
    %153 = vmatpush1.msra.mxu0 0.0
    %154 = vmatprep.subr.mxu0 0.0
    %155 = vmatpush1.msra.mxu0 0.0
    %156 = vmatprep.subr.mxu0 0.0
    %157 = vmatpush1.msra.mxu0 0.0
    %158 = vmatprep.subr.mxu0 0.0
    %159 = vmatpush1.msra.mxu0 0.0
    %160 = vmatprep.subr.mxu0 0.0
    %161 = vmatpush1.msra.mxu0 0.0
    %162 = vmatprep.subr.mxu0 0.0
    %163 = vmatpush1.msra.mxu0 0.0
    %164 = vmatprep.subr.mxu0 0.0
    %165 = vmatpush1.msra.mxu0 0.0
    %166 = vmatprep.subr.mxu0 0.0
    %167 = vmatpush1.msra.mxu0 %v131
    %168 = vmatprep.subr.mxu0 0.0
    %169 = vmatpush1.msra.mxu0 %v130
    %170 = vmatprep.subr.mxu0 0.0
    %171 = vmatpush1.msra.mxu0 %v129
    %172 = vmatprep.subr.mxu0 0.0
    %173 = vmatpush1.msra.mxu0 %v128
    %174 = vmatprep.subr.mxu0 0.0
    %175 = vmatpush2.msra.mxu0 0.0
    %176 = vmatprep.subr.mxu0 0.0
    %177 = vmatpush2.msra.mxu0 0.0
    %178 = vmatprep.subr.mxu0 0.0
    %179 = vmatpush2.msra.mxu0 0.0
    %180 = vmatprep.subr.mxu0 0.0
    %181 = vmatpush2.msra.mxu0 0.0
    %182 = vmatprep.subr.mxu0 0.0
    %183 = vmatpush2.msra.mxu0 0.0
    %184 = vmatprep.subr.mxu0 0.0
    %185 = vmatpush2.msra.mxu0 0.0
    %186 = vmatprep.subr.mxu0 0.0
    %187 = vmatpush2.msra.mxu0 0.0
    %188 = vmatprep.subr.mxu0 0.0
    %189 = vmatpush2.msra.mxu0 0.0
    %190 = vmatprep.subr.mxu0 0.0
    %191 = vmatpush2.msra.mxu0 0.0
    %192 = vmatprep.subr.mxu0 0.0
    %193 = vmatpush2.msra.mxu0 0.0
    %194 = vmatprep.subr.mxu0 0.0
    %195 = vmatpush2.msra.mxu0 0.0
    %196 = vmatprep.subr.mxu0 0.0
    %197 = vmatpush2.msra.mxu0 0.0
    %198 = vmatprep.subr.mxu0 0.0
    %199 = vmatpush2.msra.mxu0 0.0
    %200 = vmatprep.subr.mxu0 0.0
    %201 = vmatpush2.msra.mxu0 0.0
    %202 = vmatprep.subr.mxu0 0.0
    %203 = vmatpush2.msra.mxu0 0.0
    %204 = vmatprep.subr.mxu0 0.0
    %205 = vmatpush2.msra.mxu0 0.0
    %206 = vmatprep.mubr.f32.mxu0 0.0
    %207 = vmatmul.mubr.f32.gmra.mxu0 %v140
    %v208 = vpop.f32.mrf.mxu0
    %v209 = vadd.f32 %v137, %v208
    %v210 = vpop.f32.mrf.mxu0
    %211 = vdwg.mxu0
    %v212 = vtanh.pop %v209
    %v213 = vld [vmem:[%s5] sm:$0xff]
    %v214 = vld [vmem:[%s5 + $0x8] sm:$0xff]
    %v215 = vld [vmem:[%s5 + $0x10] sm:$0xff]
    %v216 = vld [vmem:[%s5 + $0x18] sm:$0xff]
    %v217 = vld [vmem:[%s6] sm:$0x1]
    %v219 = vlaneseq
    %v220 = vshrl.u32 %v219, 7
    %v221 = vsub.s32 0, %v220
    %v222 = vrot.slane %v217, %v221
    %v225 = vsel %vm53, %v212, 0
    %227 = vmatprep.subr.mxu0 0.0
    %228 = vmatpush1.msra.mxu0 0.0
    %229 = vmatprep.subr.mxu0 0.0
    %230 = vmatpush1.msra.mxu0 0.0
    %231 = vmatprep.subr.mxu0 0.0
    %232 = vmatpush1.msra.mxu0 0.0
    %233 = vmatprep.subr.mxu0 0.0
    %234 = vmatpush1.msra.mxu0 0.0
    %235 = vmatprep.subr.mxu0 0.0
    %236 = vmatpush1.msra.mxu0 0.0
    %237 = vmatprep.subr.mxu0 0.0
    %238 = vmatpush1.msra.mxu0 0.0
    %239 = vmatprep.subr.mxu0 0.0
    %240 = vmatpush1.msra.mxu0 0.0
    %241 = vmatprep.subr.mxu0 0.0
    %242 = vmatpush1.msra.mxu0 0.0
    %243 = vmatprep.subr.mxu0 0.0
    %244 = vmatpush1.msra.mxu0 0.0
    %245 = vmatprep.subr.mxu0 0.0
    %246 = vmatpush1.msra.mxu0 0.0
    %247 = vmatprep.subr.mxu0 0.0
    %248 = vmatpush1.msra.mxu0 0.0
    %249 = vmatprep.subr.mxu0 0.0
    %250 = vmatpush1.msra.mxu0 0.0
    %251 = vmatprep.subr.mxu0 0.0
    %252 = vmatpush1.msra.mxu0 %v216
    %253 = vmatprep.subr.mxu0 0.0
    %254 = vmatpush1.msra.mxu0 %v215
    %255 = vmatprep.subr.mxu0 0.0
    %256 = vmatpush1.msra.mxu0 %v214
    %257 = vmatprep.subr.mxu0 0.0
    %258 = vmatpush1.msra.mxu0 %v213
    %259 = vmatprep.subr.mxu0 0.0
    %260 = vmatpush2.msra.mxu0 0.0
    %261 = vmatprep.subr.mxu0 0.0
    %262 = vmatpush2.msra.mxu0 0.0
    %263 = vmatprep.subr.mxu0 0.0
    %264 = vmatpush2.msra.mxu0 0.0
    %265 = vmatprep.subr.mxu0 0.0
    %266 = vmatpush2.msra.mxu0 0.0
    %267 = vmatprep.subr.mxu0 0.0
    %268 = vmatpush2.msra.mxu0 0.0
    %269 = vmatprep.subr.mxu0 0.0
    %270 = vmatpush2.msra.mxu0 0.0
    %271 = vmatprep.subr.mxu0 0.0
    %272 = vmatpush2.msra.mxu0 0.0
    %273 = vmatprep.subr.mxu0 0.0
    %274 = vmatpush2.msra.mxu0 0.0
    %275 = vmatprep.subr.mxu0 0.0
    %276 = vmatpush2.msra.mxu0 0.0
    %277 = vmatprep.subr.mxu0 0.0
    %278 = vmatpush2.msra.mxu0 0.0
    %279 = vmatprep.subr.mxu0 0.0
    %280 = vmatpush2.msra.mxu0 0.0
    %281 = vmatprep.subr.mxu0 0.0
    %282 = vmatpush2.msra.mxu0 0.0
    %283 = vmatprep.subr.mxu0 0.0
    %284 = vmatpush2.msra.mxu0 0.0
    %285 = vmatprep.subr.mxu0 0.0
    %286 = vmatpush2.msra.mxu0 0.0
    %287 = vmatprep.subr.mxu0 0.0
    %288 = vmatpush2.msra.mxu0 0.0
    %289 = vmatprep.subr.mxu0 0.0
    %290 = vmatpush2.msra.mxu0 0.0
    %291 = vmatprep.mubr.f32.mxu0 0.0
    %292 = vmatmul.mubr.f32.gmra.mxu0 %v225
    %v293 = vpop.f32.mrf.mxu0
    %v294 = vadd.f32 %v222, %v293
    %v295 = vpop.f32.mrf.mxu0
    %296 = vdwg.mxu0
    %vm297 = vcmask 64512
    %v298 = vsel %vm297, %v294, -inf
    %299 = vmax.xlane.f32.xlu0 %v298
    %v300 = vpop.xlane.xlu0 %299
    %v301 = vsub.f32 %v294, %v300
    %v302 = vmul.f32 %v301, 1.442695
    %v303 = vpow.pop %v302
    %v304 = vsel %vm297, %v303, 0.0
    %305 = vadd.xlane.f32.xlu0 %v304
    %v306 = vpop.xlane.xlu0 %305
    %v307 = vrcp.pop %v306
    %v308 = vmul.f32 %v303, %v307
    %309 = vst.msk [vmem:[#allocation5] sm:$0xff] %vm297, %v308
    // Predicated region
    $region34: #{net_gaussian_forward.1} parent=1 // pred_check
      _
    $region35: #{net_gaussian_forward.1} parent=1 // pred_check_branch
      %311 = sbr.rel (0) target = $region37
    $region36: #{net_gaussian_forward.1} parent=1 // pred_region
      %s313 = ssub.s32 128, 128
      %314 = vsyncadd [#allocation4], %s313
      %s316 = sshll.u32 [#allocation5], 4
      %s317 = int_to_ptr.vmem [resolvable:$true] %s316
      %319 = dma.vmem_to_hbm [thread:$0]  %s317, 128, %s7, [#allocation4]
    $region37: #{net_gaussian_forward.1} parent=1 // pred_fallthru
      _
    // Predicated region
    $region38: #{net_gaussian_forward.1} parent=1 // pred_check
      _
    $region39: #{net_gaussian_forward.1} parent=1 // pred_check_branch
      %321 = sbr.rel (0) target = $region41
    $region40: #{net_gaussian_forward.1} parent=1 // pred_region
      %322 = dma.done [#allocation4], 128
    $region41: #{net_gaussian_forward.1} parent=1 // pred_fallthru
      _
    %323 = vsyncpa [#allocation3], 1
    %324 = vsyncpa [#allocation4], 1

</llo_original>
